<compile_context>
chip_gen: v7x
topology: tpu7x:2x2x1
jax: 0.10.0
libtpu: 0.0.40
codegen_flags: <defaults>
</compile_context>

<pallas_src>
import jax
import jax.numpy as jnp
from jax.experimental import pallas as pl
from jax.experimental.pallas import tpu as pltpu


# ----------------------------------------------------------------------------
# Fused Pallas kernel: L complex 3x3 convs + cReLU + global residual,
# single grid step, VMEM-resident ping-pong activations.
# ----------------------------------------------------------------------------
def _make_fused_kernel(L, N, H, WC2, buf_dtype):
    Hp = H + 2  # padded height (1-row zero halo top & bottom)

    def kernel(x_ref, w_ref, b_ref, out_ref, buf_ref):
        # x_ref  : (N, H, W*2C)        lane-dense packed input (f32)
        # w_ref  : (L, 3, W*2C, W*2C)  banded block-complex weights (per ky)
        # b_ref  : (L, 1, W*2C)        packed, W-tiled biases (f32)
        # out_ref: (N, H, W*2C)        f32
        # buf_ref: (2, N, H+2, W*2C)   ping-pong activation scratch

        # Zero only the halo rows (sublane axis), not the whole scratch.
        zero_row = jnp.zeros((N, 1, WC2), buf_dtype)
        for slot in range(2):
            buf_ref[slot, :, 0:1, :] = zero_row
            buf_ref[slot, :, Hp - 1:Hp, :] = zero_row

        x_f32 = x_ref[...]                                   # (N, H, WC2) f32
        buf_ref[0, :, 1:H + 1, :] = x_f32.astype(buf_dtype)

        # Static unroll over layers (L is small) -> ping-pong slots are
        # compile-time constants.
        for l in range(L):
            src = l % 2
            dst = 1 - src

            # 3x3 conv: one (N*H, WC2) @ (WC2, WC2) MXU matmul per dy tap.
            # dx shift + W zero-padding + complex channel mix live in the
            # banded weight; dy shift is a sublane-offset slice.
            a0 = buf_ref[src, :, 0:H, :].reshape(N * H, WC2)
            acc = jnp.dot(a0, w_ref[l, 0],
                          preferred_element_type=jnp.float32)
            for dy in (1, 2):
                a = buf_ref[src, :, dy:dy + H, :].reshape(N * H, WC2)
                acc += jnp.dot(a, w_ref[l, dy],
                               preferred_element_type=jnp.float32)

            acc = acc + b_ref[l]                             # f32 bias

            if l < L - 1:
                # cReLU = componentwise ReLU on real & imag halves.
                acc = jnp.maximum(acc, 0.0)
                buf_ref[dst, :, 1:H + 1, :] = (
                    acc.reshape(N, H, WC2).astype(buf_dtype))
            else:
                # Global residual: input is still resident in VMEM.
                out = acc.reshape(N, H, WC2) + x_f32
                out_ref[...] = out.astype(out_ref.dtype)

    return kernel


def _fused_residual_pallas(xp, wb, bb, compute_dtype):
    """xp: (N, H, W*2C) f32, wb: (L, 3, W*2C, W*2C), bb: (L, 1, W*2C)."""
    N, H, WC2 = xp.shape
    L = wb.shape[0]
    kernel = _make_fused_kernel(L, N, H, WC2, compute_dtype)

    return pl.pallas_call(
        kernel,
        out_shape=jax.ShapeDtypeStruct((N, H, WC2), jnp.float32),
        grid_spec=pltpu.PrefetchScalarGridSpec(
            num_scalar_prefetch=0,
            grid=(1,),
            in_specs=[
                pl.BlockSpec((N, H, WC2), lambda i: (0, 0, 0)),
                pl.BlockSpec((L, 3, WC2, WC2), lambda i: (0, 0, 0, 0)),
                pl.BlockSpec((L, 1, WC2), lambda i: (0, 0, 0)),
            ],
            out_specs=pl.BlockSpec((N, H, WC2), lambda i: (0, 0, 0)),
            scratch_shapes=[pltpu.VMEM((2, N, H + 2, WC2), compute_dtype)],
        ),
        compiler_params=pltpu.CompilerParams(
            dimension_semantics=("arbitrary",),
            vmem_limit_bytes=32 * 1024 * 1024,
        ),
    )(xp, wb, bb)


# ----------------------------------------------------------------------------
# Wrapper: pack complex NCHW -> lane-dense real layout, build banded weights.
# ----------------------------------------------------------------------------
def _banded_weight(wb_ky, W, C2):
    """wb_ky: (3, 2C, 2C) packed blocks per dx -> (W*2C, W*2C) banded matrix.

    A[x_in*2C+ci, x_out*2C+co] = wb_ky[x_in-x_out+1, ci, co] if |x_in-x_out|<=1
    (zero otherwise), so one matmul over lanes applies the dx taps, the W-edge
    zero padding and the complex channel mixing at once.
    """
    x_in = jnp.arange(W)[:, None]
    x_out = jnp.arange(W)[None, :]
    dx = x_in - x_out
    valid = (jnp.abs(dx) <= 1).astype(jnp.float32)
    blocks = wb_ky[jnp.clip(dx + 1, 0, 2)] * valid[:, :, None, None]
    return blocks.transpose(0, 2, 1, 3).reshape(W * C2, W * C2)


def init_params(key, channels, num_layers, gain=1.0):
    """Deterministic glorot-style init of complex 3x3 conv weights + bias."""
    params = []
    fan_in = channels * 9
    fan_out = channels * 9
    scale = gain * jnp.sqrt(2.0 / (fan_in + fan_out)) / jnp.sqrt(2.0)
    for _ in range(num_layers):
        key, kr, ki = jax.random.split(key, 3)
        wr = scale * jax.random.normal(kr, (3, 3, channels, channels), jnp.float32)
        wi = scale * jax.random.normal(ki, (3, 3, channels, channels), jnp.float32)
        br = jnp.zeros((channels,), jnp.float32)
        bi = jnp.zeros((channels,), jnp.float32)
        params.append((wr, wi, br, bi))
    return params


def complex_residual_block(x, params, *, use_bf16_matmul=False):
    """x: (N, C, H, W) complex64 (PyTorch NCHW).  Returns same shape/dtype."""
    N, C, H, W = x.shape
    C2 = 2 * C
    WC2 = W * C2
    compute_dtype = jnp.bfloat16 if use_bf16_matmul else jnp.float32

    xr = jnp.real(x).astype(jnp.float32)
    xi = jnp.imag(x).astype(jnp.float32)
    # NCHW complex -> (N, H, W*2C): lane index = w*2C + packed channel,
    # packed channel = [real 0..C-1 | imag 0..C-1].
    xp = (jnp.concatenate([xr, xi], axis=1)
          .transpose(0, 2, 3, 1)
          .reshape(N, H, WC2))

    # Matmul-ready weights: block-complex [[Wr, Wi], [-Wi, Wr]] per tap,
    # expanded to a banded (W*2C, W*2C) matrix per (layer, ky).
    wbands, bvecs = [], []
    for (wr, wi, br, bi) in params:
        top = jnp.concatenate([wr, wi], axis=-1)      # real-in rows
        bot = jnp.concatenate([-wi, wr], axis=-1)     # imag-in rows
        wb = jnp.concatenate([top, bot], axis=-2)     # (3, 3, 2C, 2C)
        wbands.append(jnp.stack([_banded_weight(wb[ky], W, C2)
                                 for ky in range(3)]))
        bvecs.append(jnp.tile(jnp.concatenate([br, bi]), W)[None, :])
    wb_all = jnp.stack(wbands).astype(compute_dtype)   # (L, 3, WC2, WC2)
    bb_all = jnp.stack(bvecs).astype(jnp.float32)      # (L, 1, WC2)

    out_packed = _fused_residual_pallas(xp, wb_all, bb_all, compute_dtype)

    out = out_packed.reshape(N, H, W, C2).transpose(0, 3, 1, 2)  # (N,2C,H,W)
    return (out[:, :C] + 1j * out[:, C:]).astype(jnp.complex64)


# ----------------------------------------------------------------------------
# Pure-JAX reference (for correctness check)
# ----------------------------------------------------------------------------
def _ref_conv(x, w):
    return jax.lax.conv_general_dilated(
        x, w, (1, 1), 'SAME',
        dimension_numbers=('NHWC', 'HWIO', 'NHWC'))


def reference_block(x, params):
    xr = jnp.real(x).astype(jnp.float32).transpose(0, 2, 3, 1)
    xi = jnp.imag(x).astype(jnp.float32).transpose(0, 2, 3, 1)
    rr, ri = xr, xi
    cur_r, cur_i = xr, xi
    n = len(params)
    for l, (wr, wi, br, bi) in enumerate(params):
        or_ = _ref_conv(cur_r, wr) - _ref_conv(cur_i, wi) + br
        oi_ = _ref_conv(cur_r, wi) + _ref_conv(cur_i, wr) + bi
        if l != n - 1:
            or_, oi_ = jnp.maximum(or_, 0.0), jnp.maximum(oi_, 0.0)
        else:
            or_, oi_ = or_ + rr, oi_ + ri
        cur_r, cur_i = or_, oi_
    return (cur_r + 1j * cur_i).astype(jnp.complex64).transpose(0, 3, 1, 2)


if __name__ == "__main__":
    key = jax.random.PRNGKey(0)
    k_x, k_p = jax.random.split(key)

    N, C, H, W = 2, 4, 16, 16
    num_layers = 2

    xr = jax.random.normal(jax.random.fold_in(k_x, 0), (N, C, H, W), jnp.float32)
    xi = jax.random.normal(jax.random.fold_in(k_x, 1), (N, C, H, W), jnp.float32)
    x = (xr + 1j * xi).astype(jnp.complex64)

    params = init_params(k_p, C, num_layers, gain=1.0)
    ref = reference_block(x, params)

    # f32 matmul path (default).
    out = jax.block_until_ready(complex_residual_block(x, params))
    assert out.shape == (N, C, H, W) and out.dtype == jnp.complex64
    assert jnp.allclose(out, ref, atol=1e-3, rtol=1e-3)

    # bf16 matmul path (hoisted casts, bf16 scratch, f32 accumulation /
    # bias / cReLU / residual) — validated with a tighter tolerance now that
    # all casts happen once in the wrapper.
    out_bf16 = jax.block_until_ready(
        complex_residual_block(x, params, use_bf16_matmul=True))
    assert jnp.allclose(out_bf16, ref, atol=5e-2, rtol=5e-2)

    print("KERNEL_OK")
</pallas_src>

<mosaic_0001>
module attributes {stable_mosaic.version = 11 : i64} {
  func.func @kernel(%arg0: i32, %arg1: memref<2x16x128xf32, #tpu.memory_space<vmem>>, %arg2: memref<2x3x128x128xf32, #tpu.memory_space<vmem>>, %arg3: memref<2x1x128xf32, #tpu.memory_space<vmem>>, %arg4: memref<2x16x128xf32, #tpu.memory_space<vmem>>, %arg5: memref<2x2x18x128xf32, #tpu.memory_space<vmem>>) attributes {dimension_semantics = [#tpu.dimension_semantics<arbitrary>], iteration_bounds = array<i64: 1>, scalar_prefetch = 0 : i64, scratch_operands = 1 : i64, tpu.core_type = #tpu.core_type<tc>, window_params = [{pipeline_mode = #tpu.pipeline_mode<synchronous>, transform_indices = @transform_0, window_bounds = array<i64: 2, 16, 128>}, {pipeline_mode = #tpu.pipeline_mode<synchronous>, transform_indices = @transform_1, window_bounds = array<i64: 2, 3, 128, 128>}, {pipeline_mode = #tpu.pipeline_mode<synchronous>, transform_indices = @transform_2, window_bounds = array<i64: 2, 1, 128>}, {pipeline_mode = #tpu.pipeline_mode<synchronous>, transform_indices = @transform_3, window_bounds = array<i64: 2, 16, 128>}]} {
    %cst = arith.constant 0.000000e+00 : f32
    %0 = vector.broadcast %cst : f32 to vector<2x1x128xf32>
    %c0 = arith.constant 0 : index
    %c0_0 = arith.constant 0 : index
    %c0_1 = arith.constant 0 : index
    %c0_2 = arith.constant 0 : index
    %1 = vector.load %arg5[%c0, %c0_0, %c0_1, %c0_2] : memref<2x2x18x128xf32, #tpu.memory_space<vmem>>, vector<1x2x1x128xf32>
    %2 = vector.shape_cast %1 : vector<1x2x1x128xf32> to vector<2x1x128xf32>
    %3 = vector.shape_cast %0 : vector<2x1x128xf32> to vector<1x2x1x128xf32>
    tpu.vector_store %arg5[%c0, %c0_0, %c0_1, %c0_2], %3 {strides = array<i32>} : memref<2x2x18x128xf32, #tpu.memory_space<vmem>>, vector<1x2x1x128xf32>,
    %c0_3 = arith.constant 0 : index
    %c0_4 = arith.constant 0 : index
    %c17 = arith.constant 17 : index
    %c0_5 = arith.constant 0 : index
    %4 = vector.load %arg5[%c0_3, %c0_4, %c17, %c0_5] : memref<2x2x18x128xf32, #tpu.memory_space<vmem>>, vector<1x2x1x128xf32>
    %5 = vector.shape_cast %4 : vector<1x2x1x128xf32> to vector<2x1x128xf32>
    %6 = vector.shape_cast %0 : vector<2x1x128xf32> to vector<1x2x1x128xf32>
    tpu.vector_store %arg5[%c0_3, %c0_4, %c17, %c0_5], %6 {strides = array<i32>} : memref<2x2x18x128xf32, #tpu.memory_space<vmem>>, vector<1x2x1x128xf32>,
    %c1 = arith.constant 1 : index
    %c0_6 = arith.constant 0 : index
    %c0_7 = arith.constant 0 : index
    %c0_8 = arith.constant 0 : index
    %7 = vector.load %arg5[%c1, %c0_6, %c0_7, %c0_8] : memref<2x2x18x128xf32, #tpu.memory_space<vmem>>, vector<1x2x1x128xf32>
    %8 = vector.shape_cast %7 : vector<1x2x1x128xf32> to vector<2x1x128xf32>
    %9 = vector.shape_cast %0 : vector<2x1x128xf32> to vector<1x2x1x128xf32>
    tpu.vector_store %arg5[%c1, %c0_6, %c0_7, %c0_8], %9 {strides = array<i32>} : memref<2x2x18x128xf32, #tpu.memory_space<vmem>>, vector<1x2x1x128xf32>,
    %c1_9 = arith.constant 1 : index
    %c0_10 = arith.constant 0 : index
    %c17_11 = arith.constant 17 : index
    %c0_12 = arith.constant 0 : index
    %10 = vector.load %arg5[%c1_9, %c0_10, %c17_11, %c0_12] : memref<2x2x18x128xf32, #tpu.memory_space<vmem>>, vector<1x2x1x128xf32>
    %11 = vector.shape_cast %10 : vector<1x2x1x128xf32> to vector<2x1x128xf32>
    %12 = vector.shape_cast %0 : vector<2x1x128xf32> to vector<1x2x1x128xf32>
    tpu.vector_store %arg5[%c1_9, %c0_10, %c17_11, %c0_12], %12 {strides = array<i32>} : memref<2x2x18x128xf32, #tpu.memory_space<vmem>>, vector<1x2x1x128xf32>,
    %c0_13 = arith.constant 0 : index
    %c0_14 = arith.constant 0 : index
    %c0_15 = arith.constant 0 : index
    %13 = vector.load %arg1[%c0_13, %c0_14, %c0_15] : memref<2x16x128xf32, #tpu.memory_space<vmem>>, vector<2x16x128xf32>
    %c0_16 = arith.constant 0 : index
    %c0_17 = arith.constant 0 : index
    %c1_18 = arith.constant 1 : index
    %c0_19 = arith.constant 0 : index
    %14 = vector.load %arg5[%c0_16, %c0_17, %c1_18, %c0_19] : memref<2x2x18x128xf32, #tpu.memory_space<vmem>>, vector<1x2x16x128xf32>
    %15 = vector.shape_cast %14 : vector<1x2x16x128xf32> to vector<2x16x128xf32>
    %16 = vector.shape_cast %13 : vector<2x16x128xf32> to vector<1x2x16x128xf32>
    tpu.vector_store %arg5[%c0_16, %c0_17, %c1_18, %c0_19], %16 {strides = array<i32>} : memref<2x2x18x128xf32, #tpu.memory_space<vmem>>, vector<1x2x16x128xf32>,
    %c0_20 = arith.constant 0 : index
    %c0_21 = arith.constant 0 : index
    %c0_22 = arith.constant 0 : index
    %c0_23 = arith.constant 0 : index
    %17 = vector.load %arg5[%c0_20, %c0_21, %c0_22, %c0_23] : memref<2x2x18x128xf32, #tpu.memory_space<vmem>>, vector<1x2x16x128xf32>
    %18 = vector.shape_cast %17 : vector<1x2x16x128xf32> to vector<2x16x128xf32>
    %19 = vector.shape_cast %18 : vector<2x16x128xf32> to vector<32x128xf32>
    %c0_24 = arith.constant 0 : index
    %c0_25 = arith.constant 0 : index
    %c0_26 = arith.constant 0 : index
    %c0_27 = arith.constant 0 : index
    %20 = vector.load %arg2[%c0_24, %c0_25, %c0_26, %c0_27] : memref<2x3x128x128xf32, #tpu.memory_space<vmem>>, vector<1x1x128x128xf32>
    %21 = vector.shape_cast %20 : vector<1x1x128x128xf32> to vector<128x128xf32>
    %cst_28 = arith.constant dense<0.000000e+00> : vector<32x128xf32>
    %22 = tpu.matmul %19, %21, %cst_28 {dimension_numbers = #tpu.dot_dimension_numbers<[1], [0], [0], [1], [0, 0, 1, 1], [], []>} : vector<32x128xf32>, vector<128x128xf32>, vector<32x128xf32> -> vector<32x128xf32>
    %c0_29 = arith.constant 0 : index
    %c0_30 = arith.constant 0 : index
    %c1_31 = arith.constant 1 : index
    %c0_32 = arith.constant 0 : index
    %23 = vector.load %arg5[%c0_29, %c0_30, %c1_31, %c0_32] : memref<2x2x18x128xf32, #tpu.memory_space<vmem>>, vector<1x2x16x128xf32>
    %24 = vector.shape_cast %23 : vector<1x2x16x128xf32> to vector<2x16x128xf32>
    %25 = vector.shape_cast %24 : vector<2x16x128xf32> to vector<32x128xf32>
    %c0_33 = arith.constant 0 : index
    %c1_34 = arith.constant 1 : index
    %c0_35 = arith.constant 0 : index
    %c0_36 = arith.constant 0 : index
    %26 = vector.load %arg2[%c0_33, %c1_34, %c0_35, %c0_36] : memref<2x3x128x128xf32, #tpu.memory_space<vmem>>, vector<1x1x128x128xf32>
    %27 = vector.shape_cast %26 : vector<1x1x128x128xf32> to vector<128x128xf32>
    %cst_37 = arith.constant dense<0.000000e+00> : vector<32x128xf32>
    %28 = tpu.matmul %25, %27, %cst_37 {dimension_numbers = #tpu.dot_dimension_numbers<[1], [0], [0], [1], [0, 0, 1, 1], [], []>} : vector<32x128xf32>, vector<128x128xf32>, vector<32x128xf32> -> vector<32x128xf32>
    %29 = arith.addf %22, %28 : vector<32x128xf32>
    %c0_38 = arith.constant 0 : index
    %c0_39 = arith.constant 0 : index
    %c2 = arith.constant 2 : index
    %c0_40 = arith.constant 0 : index
    %30 = vector.load %arg5[%c0_38, %c0_39, %c2, %c0_40] : memref<2x2x18x128xf32, #tpu.memory_space<vmem>>, vector<1x2x16x128xf32>
    %31 = vector.shape_cast %30 : vector<1x2x16x128xf32> to vector<2x16x128xf32>
    %32 = vector.shape_cast %31 : vector<2x16x128xf32> to vector<32x128xf32>
    %c0_41 = arith.constant 0 : index
    %c2_42 = arith.constant 2 : index
    %c0_43 = arith.constant 0 : index
    %c0_44 = arith.constant 0 : index
    %33 = vector.load %arg2[%c0_41, %c2_42, %c0_43, %c0_44] : memref<2x3x128x128xf32, #tpu.memory_space<vmem>>, vector<1x1x128x128xf32>
    %34 = vector.shape_cast %33 : vector<1x1x128x128xf32> to vector<128x128xf32>
    %cst_45 = arith.constant dense<0.000000e+00> : vector<32x128xf32>
    %35 = tpu.matmul %32, %34, %cst_45 {dimension_numbers = #tpu.dot_dimension_numbers<[1], [0], [0], [1], [0, 0, 1, 1], [], []>} : vector<32x128xf32>, vector<128x128xf32>, vector<32x128xf32> -> vector<32x128xf32>
    %36 = arith.addf %29, %35 : vector<32x128xf32>
    %c0_46 = arith.constant 0 : index
    %c0_47 = arith.constant 0 : index
    %c0_48 = arith.constant 0 : index
    %37 = vector.load %arg3[%c0_46, %c0_47, %c0_48] : memref<2x1x128xf32, #tpu.memory_space<vmem>>, vector<1x1x128xf32>
    %38 = vector.shape_cast %37 : vector<1x1x128xf32> to vector<1x128xf32>
    %39 = vector.broadcast %38 : vector<1x128xf32> to vector<32x128xf32>
    %40 = arith.addf %36, %39 : vector<32x128xf32>
    %cst_49 = arith.constant 0.000000e+00 : f32
    %41 = vector.broadcast %cst_49 : f32 to vector<32x128xf32>
    %42 = arith.maximumf %40, %41 : vector<32x128xf32>
    %43 = vector.shape_cast %42 : vector<32x128xf32> to vector<2x16x128xf32>
    %c1_50 = arith.constant 1 : index
    %c0_51 = arith.constant 0 : index
    %c1_52 = arith.constant 1 : index
    %c0_53 = arith.constant 0 : index
    %44 = vector.load %arg5[%c1_50, %c0_51, %c1_52, %c0_53] : memref<2x2x18x128xf32, #tpu.memory_space<vmem>>, vector<1x2x16x128xf32>
    %45 = vector.shape_cast %44 : vector<1x2x16x128xf32> to vector<2x16x128xf32>
    %46 = vector.shape_cast %43 : vector<2x16x128xf32> to vector<1x2x16x128xf32>
    tpu.vector_store %arg5[%c1_50, %c0_51, %c1_52, %c0_53], %46 {strides = array<i32>} : memref<2x2x18x128xf32, #tpu.memory_space<vmem>>, vector<1x2x16x128xf32>,
    %c1_54 = arith.constant 1 : index
    %c0_55 = arith.constant 0 : index
    %c0_56 = arith.constant 0 : index
    %c0_57 = arith.constant 0 : index
    %47 = vector.load %arg5[%c1_54, %c0_55, %c0_56, %c0_57] : memref<2x2x18x128xf32, #tpu.memory_space<vmem>>, vector<1x2x16x128xf32>
    %48 = vector.shape_cast %47 : vector<1x2x16x128xf32> to vector<2x16x128xf32>
    %49 = vector.shape_cast %48 : vector<2x16x128xf32> to vector<32x128xf32>
    %c1_58 = arith.constant 1 : index
    %c0_59 = arith.constant 0 : index
    %c0_60 = arith.constant 0 : index
    %c0_61 = arith.constant 0 : index
    %50 = vector.load %arg2[%c1_58, %c0_59, %c0_60, %c0_61] : memref<2x3x128x128xf32, #tpu.memory_space<vmem>>, vector<1x1x128x128xf32>
    %51 = vector.shape_cast %50 : vector<1x1x128x128xf32> to vector<128x128xf32>
    %cst_62 = arith.constant dense<0.000000e+00> : vector<32x128xf32>
    %52 = tpu.matmul %49, %51, %cst_62 {dimension_numbers = #tpu.dot_dimension_numbers<[1], [0], [0], [1], [0, 0, 1, 1], [], []>} : vector<32x128xf32>, vector<128x128xf32>, vector<32x128xf32> -> vector<32x128xf32>
    %c1_63 = arith.constant 1 : index
    %c0_64 = arith.constant 0 : index
    %c1_65 = arith.constant 1 : index
    %c0_66 = arith.constant 0 : index
    %53 = vector.load %arg5[%c1_63, %c0_64, %c1_65, %c0_66] : memref<2x2x18x128xf32, #tpu.memory_space<vmem>>, vector<1x2x16x128xf32>
    %54 = vector.shape_cast %53 : vector<1x2x16x128xf32> to vector<2x16x128xf32>
    %55 = vector.shape_cast %54 : vector<2x16x128xf32> to vector<32x128xf32>
    %c1_67 = arith.constant 1 : index
    %c1_68 = arith.constant 1 : index
    %c0_69 = arith.constant 0 : index
    %c0_70 = arith.constant 0 : index
    %56 = vector.load %arg2[%c1_67, %c1_68, %c0_69, %c0_70] : memref<2x3x128x128xf32, #tpu.memory_space<vmem>>, vector<1x1x128x128xf32>
    %57 = vector.shape_cast %56 : vector<1x1x128x128xf32> to vector<128x128xf32>
    %cst_71 = arith.constant dense<0.000000e+00> : vector<32x128xf32>
    %58 = tpu.matmul %55, %57, %cst_71 {dimension_numbers = #tpu.dot_dimension_numbers<[1], [0], [0], [1], [0, 0, 1, 1], [], []>} : vector<32x128xf32>, vector<128x128xf32>, vector<32x128xf32> -> vector<32x128xf32>
    %59 = arith.addf %52, %58 : vector<32x128xf32>
    %c1_72 = arith.constant 1 : index
    %c0_73 = arith.constant 0 : index
    %c2_74 = arith.constant 2 : index
    %c0_75 = arith.constant 0 : index
    %60 = vector.load %arg5[%c1_72, %c0_73, %c2_74, %c0_75] : memref<2x2x18x128xf32, #tpu.memory_space<vmem>>, vector<1x2x16x128xf32>
    %61 = vector.shape_cast %60 : vector<1x2x16x128xf32> to vector<2x16x128xf32>
    %62 = vector.shape_cast %61 : vector<2x16x128xf32> to vector<32x128xf32>
    %c1_76 = arith.constant 1 : index
    %c2_77 = arith.constant 2 : index
    %c0_78 = arith.constant 0 : index
    %c0_79 = arith.constant 0 : index
    %63 = vector.load %arg2[%c1_76, %c2_77, %c0_78, %c0_79] : memref<2x3x128x128xf32, #tpu.memory_space<vmem>>, vector<1x1x128x128xf32>
    %64 = vector.shape_cast %63 : vector<1x1x128x128xf32> to vector<128x128xf32>
    %cst_80 = arith.constant dense<0.000000e+00> : vector<32x128xf32>
    %65 = tpu.matmul %62, %64, %cst_80 {dimension_numbers = #tpu.dot_dimension_numbers<[1], [0], [0], [1], [0, 0, 1, 1], [], []>} : vector<32x128xf32>, vector<128x128xf32>, vector<32x128xf32> -> vector<32x128xf32>
    %66 = arith.addf %59, %65 : vector<32x128xf32>
    %c1_81 = arith.constant 1 : index
    %c0_82 = arith.constant 0 : index
    %c0_83 = arith.constant 0 : index
    %67 = vector.load %arg3[%c1_81, %c0_82, %c0_83] : memref<2x1x128xf32, #tpu.memory_space<vmem>>, vector<1x1x128xf32>
    %68 = vector.shape_cast %67 : vector<1x1x128xf32> to vector<1x128xf32>
    %69 = vector.broadcast %68 : vector<1x128xf32> to vector<32x128xf32>
    %70 = arith.addf %66, %69 : vector<32x128xf32>
    %71 = vector.shape_cast %70 : vector<32x128xf32> to vector<2x16x128xf32>
    %72 = arith.addf %71, %13 : vector<2x16x128xf32>
    %c0_84 = arith.constant 0 : index
    %c0_85 = arith.constant 0 : index
    %c0_86 = arith.constant 0 : index
    %73 = vector.load %arg4[%c0_84, %c0_85, %c0_86] : memref<2x16x128xf32, #tpu.memory_space<vmem>>, vector<2x16x128xf32>
    tpu.vector_store %arg4[%c0_84, %c0_85, %c0_86], %72 {strides = array<i32>} : memref<2x16x128xf32, #tpu.memory_space<vmem>>, vector<2x16x128xf32>,
    return
  }
  func.func @transform_0(%arg0: i32) -> (i32, i32, i32) {
    %c0_i32 = arith.constant 0 : i32
    %c0_i32_0 = arith.constant 0 : i32
    %c0_i32_1 = arith.constant 0 : i32
    %c0_i32_2 = arith.constant 0 : i32
    return %c0_i32, %c0_i32_0, %c0_i32_1 : i32, i32, i32
  }
  func.func @transform_1(%arg0: i32) -> (i32, i32, i32, i32) {
    %c0_i32 = arith.constant 0 : i32
    %c0_i32_0 = arith.constant 0 : i32
    %c0_i32_1 = arith.constant 0 : i32
    %c0_i32_2 = arith.constant 0 : i32
    %c0_i32_3 = arith.constant 0 : i32
    return %c0_i32, %c0_i32_0, %c0_i32_1, %c0_i32_2 : i32, i32, i32, i32
  }
  func.func @transform_2(%arg0: i32) -> (i32, i32, i32) {
    %c0_i32 = arith.constant 0 : i32
    %c0_i32_0 = arith.constant 0 : i32
    %c0_i32_1 = arith.constant 0 : i32
    %c0_i32_2 = arith.constant 0 : i32
    return %c0_i32, %c0_i32_0, %c0_i32_1 : i32, i32, i32
  }
  func.func @transform_3(%arg0: i32) -> (i32, i32, i32) {
    %c0_i32 = arith.constant 0 : i32
    %c0_i32_0 = arith.constant 0 : i32
    %c0_i32_1 = arith.constant 0 : i32
    %c0_i32_2 = arith.constant 0 : i32
    return %c0_i32, %c0_i32_0, %c0_i32_1 : i32, i32, i32
  }
}

</mosaic_0001>

<llo_original>
// kernel: tpu_custom_call.1
$region0: #{tpu_custom_call.1}
  #allocation0 [shape = 'u32[]', space=smem, size = 0x4, offset = 0x4, fixed_abs, tag = 'smem constant byte address 0x4 - core index']
  #allocation1 [shape = 'u32[144,128]{1,0:T(1,128)}', space=vmem, size = 0x12000, scoped, tag = 'internal scratch']
  #allocation2 [shape = 'f32[2,2,18,128]{3,2,1,0:T(8,128)}', space=vmem, size = 0xc000, scoped, tag = 'scratch operand']
  %s0 = inlined_call_operand.hbm [shape: f32[2,16,128], index: 0, kind: input, shape index: {}]
  %s1 = inlined_call_operand.hbm [shape: f32[2,3,128,128], index: 1, kind: input, shape index: {}]
  %s2 = inlined_call_operand.vmem [shape: f32[2,1,128], index: 2, kind: input, shape index: {}]
  %s3 = inlined_call_operand.hbm [shape: f32[2,16,128], index: 3, kind: output, shape index: {}]
  %s4 = sld [smem:[#allocation0]]
  $region30: #{tpu_custom_call.1} parent=0
    _
  %s6 = ssub.s32 1, %s4
  %s7 = scalar_select 0, %s6, %s4
  $region1: #{tpu_custom_call.1} parent=0
    #allocation3 [shape = 'u8[16384]{0}', space=vmem, size = 0x4000, scoped, tag = 'input window, operand 0, single buffered']
    #allocation4 [shape = 's32[1]{0}', space=sflag, size = 0x4, scoped, tag = 'scoped memory for tpu_custom_call.1']
    #allocation5 [shape = 's32[1]{0}', space=sflag, size = 0x4, scoped, tag = 'scoped memory for tpu_custom_call.1']
    #allocation6 [shape = 'u8[393216]{0}', space=vmem, size = 0x60000, scoped, tag = 'input window, operand 1, single buffered']
    #allocation7 [shape = 's32[1]{0}', space=sflag, size = 0x4, scoped, tag = 'scoped memory for tpu_custom_call.1']
    #allocation8 [shape = 'u8[16384]{0}', space=vmem, size = 0x4000, scoped, tag = 'output window, operand 0, single buffered']
    %8 = vsyncpa [#allocation4], 0
    %9 = vsyncpa [#allocation7], 0
    %10 = vsyncpa [#allocation5], 0
    // Predicated region
    $region2: #{tpu_custom_call.1} parent=1 // pred_check
      _
    $region3: #{tpu_custom_call.1} parent=1 // pred_check_branch
      %12 = sbr.rel (0) target = $region5
    $region4: #{tpu_custom_call.1} parent=1 // pred_region
      %s14 = ssub.s32 512, 512
      %15 = vsyncadd [#allocation4], %s14
      %s16 = sshll.u32 [#allocation3], 4
      %s17 = int_to_ptr.vmem [resolvable:$true] %s16
      %22 = dma.hbm_to_vmem [thread:$0]  %s0, 512, %s17, [#allocation4], 128, 128, 8
    $region5: #{tpu_custom_call.1} parent=1 // pred_fallthru
      _
    // Predicated region
    $region6: #{tpu_custom_call.1} parent=1 // pred_check
      _
    $region7: #{tpu_custom_call.1} parent=1 // pred_check_branch
      %24 = sbr.rel (0) target = $region9
    $region8: #{tpu_custom_call.1} parent=1 // pred_region
      %s26 = ssub.s32 12288, 12288
      %27 = vsyncadd [#allocation7], %s26
      %s28 = sshll.u32 [#allocation6], 4
      %s29 = int_to_ptr.vmem [resolvable:$true] %s28
      %34 = dma.hbm_to_vmem [thread:$0]  %s1, 12288, %s29, [#allocation7], 128, 128, 8
    $region9: #{tpu_custom_call.1} parent=1 // pred_fallthru
      _
    // Predicated region
    $region10: #{tpu_custom_call.1} parent=1 // pred_check
      _
    $region11: #{tpu_custom_call.1} parent=1 // pred_check_branch
      %36 = sbr.rel (0) target = $region13
    $region12: #{tpu_custom_call.1} parent=1 // pred_region
      _
    $region13: #{tpu_custom_call.1} parent=1 // pred_fallthru
      _
    // Predicated region
    $region14: #{tpu_custom_call.1} parent=1 // pred_check
      _
    $region15: #{tpu_custom_call.1} parent=1 // pred_check_branch
      %38 = sbr.rel (0) target = $region17
    $region16: #{tpu_custom_call.1} parent=1 // pred_region
      %39 = dma.done [#allocation4], 512
    $region17: #{tpu_custom_call.1} parent=1 // pred_fallthru
      _
    // Predicated region
    $region18: #{tpu_custom_call.1} parent=1 // pred_check
      _
    $region19: #{tpu_custom_call.1} parent=1 // pred_check_branch
      %41 = sbr.rel (0) target = $region21
    $region20: #{tpu_custom_call.1} parent=1 // pred_region
      %42 = dma.done [#allocation7], 12288
    $region21: #{tpu_custom_call.1} parent=1 // pred_fallthru
      _
    %43 = vst [vmem:[#allocation2] sm:$0x1] 0.0
    %44 = vst [vmem:[#allocation2 + $0x18] sm:$0x1] 0.0
    %45 = vst [vmem:[#allocation2 + $0x11] sm:$0x1] 0.0
    %46 = vst [vmem:[#allocation2 + $0x29] sm:$0x1] 0.0
    %s47 = scalar_lea.vmem [#allocation2], 48
    %48 = vst [vmem:[%s47] sm:$0x1] 0.0
    %49 = vst [vmem:[%s47 + $0x18] sm:$0x1] 0.0
    %50 = vst [vmem:[%s47 + $0x11] sm:$0x1] 0.0
    %51 = vst [vmem:[%s47 + $0x29] sm:$0x1] 0.0
    %v52 = vld [vmem:[#allocation3] sm:$0xff]
    %v53 = vld [vmem:[#allocation3 + $0x8] sm:$0xff]
    %v54 = vld [vmem:[#allocation3 + $0x10] sm:$0xff]
    %v55 = vld [vmem:[#allocation3 + $0x18] sm:$0xff]
    %56 = vst [vmem:[#allocation2 + $0x1] sm:$0xff] %v52
    %57 = vst [vmem:[#allocation2 + $0x9] sm:$0xff] %v53
    %58 = vst [vmem:[#allocation2 + $0x19] sm:$0xff] %v54
    %59 = vst [vmem:[#allocation2 + $0x21] sm:$0xff] %v55
    %v60 = vld [vmem:[#allocation2] sm:$0xff]
    %v61 = vld [vmem:[#allocation2 + $0x8] sm:$0xff]
    %v62 = vld [vmem:[#allocation2 + $0x18] sm:$0xff]
    %v63 = vld [vmem:[#allocation2 + $0x20] sm:$0xff]
    %v64 = vld [vmem:[#allocation6] sm:$0xff]
    %v65 = vld [vmem:[#allocation6 + $0x8] sm:$0xff]
    %v66 = vld [vmem:[#allocation6 + $0x10] sm:$0xff]
    %v67 = vld [vmem:[#allocation6 + $0x18] sm:$0xff]
    %v68 = vld [vmem:[#allocation6 + $0x20] sm:$0xff]
    %v69 = vld [vmem:[#allocation6 + $0x28] sm:$0xff]
    %v70 = vld [vmem:[#allocation6 + $0x30] sm:$0xff]
    %v71 = vld [vmem:[#allocation6 + $0x38] sm:$0xff]
    %v72 = vld [vmem:[#allocation6 + $0x40] sm:$0xff]
    %v73 = vld [vmem:[#allocation6 + $0x48] sm:$0xff]
    %v74 = vld [vmem:[#allocation6 + $0x50] sm:$0xff]
    %v75 = vld [vmem:[#allocation6 + $0x58] sm:$0xff]
    %v76 = vld [vmem:[#allocation6 + $0x60] sm:$0xff]
    %v77 = vld [vmem:[#allocation6 + $0x68] sm:$0xff]
    %v78 = vld [vmem:[#allocation6 + $0x70] sm:$0xff]
    %v79 = vld [vmem:[#allocation6 + $0x78] sm:$0xff]
    %v80 = vld [vmem:[#allocation2 + $0x1] sm:$0xff]
    %v81 = vld [vmem:[#allocation2 + $0x9] sm:$0xff]
    %v82 = vld [vmem:[#allocation2 + $0x19] sm:$0xff]
    %v83 = vld [vmem:[#allocation2 + $0x21] sm:$0xff]
    %s84 = scalar_lea.vmem [#allocation6], 128
    %v85 = vld [vmem:[%s84] sm:$0xff]
    %v86 = vld [vmem:[%s84 + $0x8] sm:$0xff]
    %v87 = vld [vmem:[%s84 + $0x10] sm:$0xff]
    %v88 = vld [vmem:[%s84 + $0x18] sm:$0xff]
    %v89 = vld [vmem:[%s84 + $0x20] sm:$0xff]
    %v90 = vld [vmem:[%s84 + $0x28] sm:$0xff]
    %v91 = vld [vmem:[%s84 + $0x30] sm:$0xff]
    %v92 = vld [vmem:[%s84 + $0x38] sm:$0xff]
    %v93 = vld [vmem:[%s84 + $0x40] sm:$0xff]
    %v94 = vld [vmem:[%s84 + $0x48] sm:$0xff]
    %v95 = vld [vmem:[%s84 + $0x50] sm:$0xff]
    %v96 = vld [vmem:[%s84 + $0x58] sm:$0xff]
    %v97 = vld [vmem:[%s84 + $0x60] sm:$0xff]
    %v98 = vld [vmem:[%s84 + $0x68] sm:$0xff]
    %v99 = vld [vmem:[%s84 + $0x70] sm:$0xff]
    %v100 = vld [vmem:[%s84 + $0x78] sm:$0xff]
    %101 = vmatprep.subr.mxu0 0.0
    %102 = vmatpush1.msra.mxu0 %v85
    %103 = vmatprep.subr.mxu0 0.0
    %104 = vmatpush1.msra.mxu0 %v86
    %105 = vmatprep.subr.mxu0 0.0
    %106 = vmatpush1.msra.mxu0 %v87
    %107 = vmatprep.subr.mxu0 0.0
    %108 = vmatpush1.msra.mxu0 %v88
    %109 = vmatprep.subr.mxu0 0.0
    %110 = vmatpush1.msra.mxu0 %v89
    %111 = vmatprep.subr.mxu0 0.0
    %112 = vmatpush1.msra.mxu0 %v90
    %113 = vmatprep.subr.mxu0 0.0
    %114 = vmatpush1.msra.mxu0 %v91
    %115 = vmatprep.subr.mxu0 0.0
    %116 = vmatpush1.msra.mxu0 %v92
    %117 = vmatprep.subr.mxu0 0.0
    %118 = vmatpush1.msra.mxu0 %v93
    %119 = vmatprep.subr.mxu0 0.0
    %120 = vmatpush1.msra.mxu0 %v94
    %121 = vmatprep.subr.mxu0 0.0
    %122 = vmatpush1.msra.mxu0 %v95
    %123 = vmatprep.subr.mxu0 0.0
    %124 = vmatpush1.msra.mxu0 %v96
    %125 = vmatprep.subr.mxu0 0.0
    %126 = vmatpush1.msra.mxu0 %v97
    %127 = vmatprep.subr.mxu0 0.0
    %128 = vmatpush1.msra.mxu0 %v98
    %129 = vmatprep.subr.mxu0 0.0
    %130 = vmatpush1.msra.mxu0 %v99
    %131 = vmatprep.subr.mxu0 0.0
    %132 = vmatpush1.msra.mxu0 %v100
    %133 = vmatprep.subr.mxu0 0.0
    %134 = vmatpush1.msra.mxu0 0.0
    %135 = vmatprep.subr.mxu0 0.0
    %136 = vmatpush1.msra.mxu0 0.0
    %137 = vmatprep.subr.mxu0 0.0
    %138 = vmatpush1.msra.mxu0 0.0
    %139 = vmatprep.subr.mxu0 0.0
    %140 = vmatpush1.msra.mxu0 0.0
    %141 = vmatprep.subr.mxu0 0.0
    %142 = vmatpush1.msra.mxu0 0.0
    %143 = vmatprep.subr.mxu0 0.0
    %144 = vmatpush1.msra.mxu0 0.0
    %145 = vmatprep.subr.mxu0 0.0
    %146 = vmatpush1.msra.mxu0 0.0
    %147 = vmatprep.subr.mxu0 0.0
    %148 = vmatpush1.msra.mxu0 0.0
    %149 = vmatprep.subr.mxu0 0.0
    %150 = vmatpush1.msra.mxu0 0.0
    %151 = vmatprep.subr.mxu0 0.0
    %152 = vmatpush1.msra.mxu0 0.0
    %153 = vmatprep.subr.mxu0 0.0
    %154 = vmatpush1.msra.mxu0 0.0
    %155 = vmatprep.subr.mxu0 0.0
    %156 = vmatpush1.msra.mxu0 0.0
    %157 = vmatprep.subr.mxu0 0.0
    %158 = vmatpush1.msra.mxu0 0.0
    %159 = vmatprep.subr.mxu0 0.0
    %160 = vmatpush1.msra.mxu0 0.0
    %161 = vmatprep.subr.mxu0 0.0
    %162 = vmatpush1.msra.mxu0 0.0
    %163 = vmatprep.subr.mxu0 0.0
    %164 = vmatpush1.msra.mxu0 0.0
    %165 = vmatprep.mubr.f32.mxu0 0.0
    %166 = vmatmul.mubr.f32.gmra.mrb[0].mxu0 %v80
    %v167 = vpop.f32.mrb[0].mxu0
    %v168 = vadd.f32 0.0, %v167
    %v169 = vpop.f32.mrb[0].mxu0
    %170 = vmatprep.mubr.f32.mxu0 0.0
    %171 = vmatmul.mubr.f32.gmra.mrb[0].mxu0 %v81
    %v172 = vpop.f32.mrb[0].mxu0
    %v173 = vadd.f32 0.0, %v172
    %v174 = vpop.f32.mrb[0].mxu0
    %175 = vmatprep.mubr.f32.mxu0 0.0
    %176 = vmatmul.mubr.f32.gmra.mrb[0].mxu0 %v82
    %v177 = vpop.f32.mrb[0].mxu0
    %v178 = vadd.f32 0.0, %v177
    %v179 = vpop.f32.mrb[0].mxu0
    %180 = vmatprep.mubr.f32.mxu0 0.0
    %181 = vmatmul.mubr.f32.gmra.mrb[0].mxu0 %v83
    %v182 = vpop.f32.mrb[0].mxu0
    %v183 = vadd.f32 0.0, %v182
    %v184 = vpop.f32.mrb[0].mxu0
    %185 = vdwg.mxu0
    %186 = vmatprep.subr.mxu0 0.0
    %187 = vmatpush1.msra.mxu0 %v64
    %188 = vmatprep.subr.mxu0 0.0
    %189 = vmatpush1.msra.mxu0 %v65
    %190 = vmatprep.subr.mxu0 0.0
    %191 = vmatpush1.msra.mxu0 %v66
    %192 = vmatprep.subr.mxu0 0.0
    %193 = vmatpush1.msra.mxu0 %v67
    %194 = vmatprep.subr.mxu0 0.0
    %195 = vmatpush1.msra.mxu0 %v68
    %196 = vmatprep.subr.mxu0 0.0
    %197 = vmatpush1.msra.mxu0 %v69
    %198 = vmatprep.subr.mxu0 0.0
    %199 = vmatpush1.msra.mxu0 %v70
    %200 = vmatprep.subr.mxu0 0.0
    %201 = vmatpush1.msra.mxu0 %v71
    %202 = vmatprep.subr.mxu0 0.0
    %203 = vmatpush1.msra.mxu0 %v72
    %204 = vmatprep.subr.mxu0 0.0
    %205 = vmatpush1.msra.mxu0 %v73
    %206 = vmatprep.subr.mxu0 0.0
    %207 = vmatpush1.msra.mxu0 %v74
    %208 = vmatprep.subr.mxu0 0.0
    %209 = vmatpush1.msra.mxu0 %v75
    %210 = vmatprep.subr.mxu0 0.0
    %211 = vmatpush1.msra.mxu0 %v76
    %212 = vmatprep.subr.mxu0 0.0
    %213 = vmatpush1.msra.mxu0 %v77
    %214 = vmatprep.subr.mxu0 0.0
    %215 = vmatpush1.msra.mxu0 %v78
    %216 = vmatprep.subr.mxu0 0.0
    %217 = vmatpush1.msra.mxu0 %v79
    %218 = vmatprep.subr.mxu0 0.0
    %219 = vmatpush1.msra.mxu0 0.0
    %220 = vmatprep.subr.mxu0 0.0
    %221 = vmatpush1.msra.mxu0 0.0
    %222 = vmatprep.subr.mxu0 0.0
    %223 = vmatpush1.msra.mxu0 0.0
    %224 = vmatprep.subr.mxu0 0.0
    %225 = vmatpush1.msra.mxu0 0.0
    %226 = vmatprep.subr.mxu0 0.0
    %227 = vmatpush1.msra.mxu0 0.0
    %228 = vmatprep.subr.mxu0 0.0
    %229 = vmatpush1.msra.mxu0 0.0
    %230 = vmatprep.subr.mxu0 0.0
    %231 = vmatpush1.msra.mxu0 0.0
    %232 = vmatprep.subr.mxu0 0.0
    %233 = vmatpush1.msra.mxu0 0.0
    %234 = vmatprep.subr.mxu0 0.0
    %235 = vmatpush1.msra.mxu0 0.0
    %236 = vmatprep.subr.mxu0 0.0
    %237 = vmatpush1.msra.mxu0 0.0
    %238 = vmatprep.subr.mxu0 0.0
    %239 = vmatpush1.msra.mxu0 0.0
    %240 = vmatprep.subr.mxu0 0.0
    %241 = vmatpush1.msra.mxu0 0.0
    %242 = vmatprep.subr.mxu0 0.0
    %243 = vmatpush1.msra.mxu0 0.0
    %244 = vmatprep.subr.mxu0 0.0
    %245 = vmatpush1.msra.mxu0 0.0
    %246 = vmatprep.subr.mxu0 0.0
    %247 = vmatpush1.msra.mxu0 0.0
    %248 = vmatprep.subr.mxu0 0.0
    %249 = vmatpush1.msra.mxu0 0.0
    %250 = vmatprep.mubr.f32.mxu0 0.0
    %251 = vmatmul.mubr.f32.gmra.mrb[0].mxu0 %v60
    %v252 = vpop.f32.mrb[0].mxu0
    %v253 = vadd.f32 %v168, %v252
    %v254 = vpop.f32.mrb[0].mxu0
    %255 = vmatprep.mubr.f32.mxu0 0.0
    %256 = vmatmul.mubr.f32.gmra.mrb[0].mxu0 %v61
    %v257 = vpop.f32.mrb[0].mxu0
    %v258 = vadd.f32 %v173, %v257
    %v259 = vpop.f32.mrb[0].mxu0
    %260 = vmatprep.mubr.f32.mxu0 0.0
    %261 = vmatmul.mubr.f32.gmra.mrb[0].mxu0 %v62
    %v262 = vpop.f32.mrb[0].mxu0
    %v263 = vadd.f32 %v178, %v262
    %v264 = vpop.f32.mrb[0].mxu0
    %265 = vmatprep.mubr.f32.mxu0 0.0
    %266 = vmatmul.mubr.f32.gmra.mrb[0].mxu0 %v63
    %v267 = vpop.f32.mrb[0].mxu0
    %v268 = vadd.f32 %v183, %v267
    %v269 = vpop.f32.mrb[0].mxu0
    %270 = vdwg.mxu0
    %v271 = vld [vmem:[#allocation2 + $0x2] sm:$0xff]
    %v272 = vld [vmem:[#allocation2 + $0xa] sm:$0xff]
    %v273 = vld [vmem:[#allocation2 + $0x1a] sm:$0xff]
    %v274 = vld [vmem:[#allocation2 + $0x22] sm:$0xff]
    %s275 = scalar_lea.vmem [#allocation6], 256
    %v276 = vld [vmem:[%s275] sm:$0xff]
    %v277 = vld [vmem:[%s275 + $0x8] sm:$0xff]
    %v278 = vld [vmem:[%s275 + $0x10] sm:$0xff]
    %v279 = vld [vmem:[%s275 + $0x18] sm:$0xff]
    %v280 = vld [vmem:[%s275 + $0x20] sm:$0xff]
    %v281 = vld [vmem:[%s275 + $0x28] sm:$0xff]
    %v282 = vld [vmem:[%s275 + $0x30] sm:$0xff]
    %v283 = vld [vmem:[%s275 + $0x38] sm:$0xff]
    %v284 = vld [vmem:[%s275 + $0x40] sm:$0xff]
    %v285 = vld [vmem:[%s275 + $0x48] sm:$0xff]
    %v286 = vld [vmem:[%s275 + $0x50] sm:$0xff]
    %v287 = vld [vmem:[%s275 + $0x58] sm:$0xff]
    %v288 = vld [vmem:[%s275 + $0x60] sm:$0xff]
    %v289 = vld [vmem:[%s275 + $0x68] sm:$0xff]
    %v290 = vld [vmem:[%s275 + $0x70] sm:$0xff]
    %v291 = vld [vmem:[%s275 + $0x78] sm:$0xff]
    %292 = vmatprep.subr.mxu0 0.0
    %293 = vmatpush1.msra.mxu0 %v276
    %294 = vmatprep.subr.mxu0 0.0
    %295 = vmatpush1.msra.mxu0 %v277
    %296 = vmatprep.subr.mxu0 0.0
    %297 = vmatpush1.msra.mxu0 %v278
    %298 = vmatprep.subr.mxu0 0.0
    %299 = vmatpush1.msra.mxu0 %v279
    %300 = vmatprep.subr.mxu0 0.0
    %301 = vmatpush1.msra.mxu0 %v280
    %302 = vmatprep.subr.mxu0 0.0
    %303 = vmatpush1.msra.mxu0 %v281
    %304 = vmatprep.subr.mxu0 0.0
    %305 = vmatpush1.msra.mxu0 %v282
    %306 = vmatprep.subr.mxu0 0.0
    %307 = vmatpush1.msra.mxu0 %v283
    %308 = vmatprep.subr.mxu0 0.0
    %309 = vmatpush1.msra.mxu0 %v284
    %310 = vmatprep.subr.mxu0 0.0
    %311 = vmatpush1.msra.mxu0 %v285
    %312 = vmatprep.subr.mxu0 0.0
    %313 = vmatpush1.msra.mxu0 %v286
    %314 = vmatprep.subr.mxu0 0.0
    %315 = vmatpush1.msra.mxu0 %v287
    %316 = vmatprep.subr.mxu0 0.0
    %317 = vmatpush1.msra.mxu0 %v288
    %318 = vmatprep.subr.mxu0 0.0
    %319 = vmatpush1.msra.mxu0 %v289
    %320 = vmatprep.subr.mxu0 0.0
    %321 = vmatpush1.msra.mxu0 %v290
    %322 = vmatprep.subr.mxu0 0.0
    %323 = vmatpush1.msra.mxu0 %v291
    %324 = vmatprep.subr.mxu0 0.0
    %325 = vmatpush1.msra.mxu0 0.0
    %326 = vmatprep.subr.mxu0 0.0
    %327 = vmatpush1.msra.mxu0 0.0
    %328 = vmatprep.subr.mxu0 0.0
    %329 = vmatpush1.msra.mxu0 0.0
    %330 = vmatprep.subr.mxu0 0.0
    %331 = vmatpush1.msra.mxu0 0.0
    %332 = vmatprep.subr.mxu0 0.0
    %333 = vmatpush1.msra.mxu0 0.0
    %334 = vmatprep.subr.mxu0 0.0
    %335 = vmatpush1.msra.mxu0 0.0
    %336 = vmatprep.subr.mxu0 0.0
    %337 = vmatpush1.msra.mxu0 0.0
    %338 = vmatprep.subr.mxu0 0.0
    %339 = vmatpush1.msra.mxu0 0.0
    %340 = vmatprep.subr.mxu0 0.0
    %341 = vmatpush1.msra.mxu0 0.0
    %342 = vmatprep.subr.mxu0 0.0
    %343 = vmatpush1.msra.mxu0 0.0
    %344 = vmatprep.subr.mxu0 0.0
    %345 = vmatpush1.msra.mxu0 0.0
    %346 = vmatprep.subr.mxu0 0.0
    %347 = vmatpush1.msra.mxu0 0.0
    %348 = vmatprep.subr.mxu0 0.0
    %349 = vmatpush1.msra.mxu0 0.0
    %350 = vmatprep.subr.mxu0 0.0
    %351 = vmatpush1.msra.mxu0 0.0
    %352 = vmatprep.subr.mxu0 0.0
    %353 = vmatpush1.msra.mxu0 0.0
    %354 = vmatprep.subr.mxu0 0.0
    %355 = vmatpush1.msra.mxu0 0.0
    %356 = vmatprep.mubr.f32.mxu0 0.0
    %357 = vmatmul.mubr.f32.gmra.mrb[0].mxu0 %v271
    %v358 = vpop.f32.mrb[0].mxu0
    %v359 = vadd.f32 0.0, %v358
    %v360 = vpop.f32.mrb[0].mxu0
    %361 = vmatprep.mubr.f32.mxu0 0.0
    %362 = vmatmul.mubr.f32.gmra.mrb[0].mxu0 %v272
    %v363 = vpop.f32.mrb[0].mxu0
    %v364 = vadd.f32 0.0, %v363
    %v365 = vpop.f32.mrb[0].mxu0
    %366 = vmatprep.mubr.f32.mxu0 0.0
    %367 = vmatmul.mubr.f32.gmra.mrb[0].mxu0 %v273
    %v368 = vpop.f32.mrb[0].mxu0
    %v369 = vadd.f32 0.0, %v368
    %v370 = vpop.f32.mrb[0].mxu0
    %371 = vmatprep.mubr.f32.mxu0 0.0
    %372 = vmatmul.mubr.f32.gmra.mrb[0].mxu0 %v274
    %v373 = vpop.f32.mrb[0].mxu0
    %v374 = vadd.f32 0.0, %v373
    %v375 = vpop.f32.mrb[0].mxu0
    %376 = vdwg.mxu0
    %v377 = vadd.f32 %v253, %v359
    %v378 = vadd.f32 %v258, %v364
    %v379 = vadd.f32 %v263, %v369
    %v380 = vadd.f32 %v268, %v374
    %v381 = vld [vmem:[%s2] sm:$0x1]
    %v383 = vlaneseq
    %v384 = vshrl.u32 %v383, 7
    %v385 = vsub.s32 0, %v384
    %v386 = vrot.slane %v381, %v385
    %v388 = vadd.f32 %v377, %v386
    %v389 = vadd.f32 %v378, %v386
    %v390 = vadd.f32 %v379, %v386
    %v391 = vadd.f32 %v380, %v386
    %v392 = vmax.f32 %v388, 0.0
    %v393 = vmax.f32 %v389, 0.0
    %v394 = vmax.f32 %v390, 0.0
    %v395 = vmax.f32 %v391, 0.0
    %396 = vst [vmem:[%s47 + $0x1] sm:$0xff] %v392
    %397 = vst [vmem:[%s47 + $0x9] sm:$0xff] %v393
    %398 = vst [vmem:[%s47 + $0x19] sm:$0xff] %v394
    %399 = vst [vmem:[%s47 + $0x21] sm:$0xff] %v395
    %v400 = vld [vmem:[%s47] sm:$0xff]
    %v401 = vld [vmem:[%s47 + $0x8] sm:$0xff]
    %v402 = vld [vmem:[%s47 + $0x18] sm:$0xff]
    %v403 = vld [vmem:[%s47 + $0x20] sm:$0xff]
    %s404 = scalar_lea.vmem [#allocation6], 384
    %v405 = vld [vmem:[%s404] sm:$0xff]
    %v406 = vld [vmem:[%s404 + $0x8] sm:$0xff]
    %v407 = vld [vmem:[%s404 + $0x10] sm:$0xff]
    %v408 = vld [vmem:[%s404 + $0x18] sm:$0xff]
    %v409 = vld [vmem:[%s404 + $0x20] sm:$0xff]
    %v410 = vld [vmem:[%s404 + $0x28] sm:$0xff]
    %v411 = vld [vmem:[%s404 + $0x30] sm:$0xff]
    %v412 = vld [vmem:[%s404 + $0x38] sm:$0xff]
    %v413 = vld [vmem:[%s404 + $0x40] sm:$0xff]
    %v414 = vld [vmem:[%s404 + $0x48] sm:$0xff]
    %v415 = vld [vmem:[%s404 + $0x50] sm:$0xff]
    %v416 = vld [vmem:[%s404 + $0x58] sm:$0xff]
    %v417 = vld [vmem:[%s404 + $0x60] sm:$0xff]
    %v418 = vld [vmem:[%s404 + $0x68] sm:$0xff]
    %v419 = vld [vmem:[%s404 + $0x70] sm:$0xff]
    %v420 = vld [vmem:[%s404 + $0x78] sm:$0xff]
    %v421 = vld [vmem:[%s47 + $0x1] sm:$0xff]
    %v422 = vld [vmem:[%s47 + $0x9] sm:$0xff]
    %v423 = vld [vmem:[%s47 + $0x19] sm:$0xff]
    %v424 = vld [vmem:[%s47 + $0x21] sm:$0xff]
    %s425 = scalar_lea.vmem [#allocation6], 512
    %v426 = vld [vmem:[%s425] sm:$0xff]
    %v427 = vld [vmem:[%s425 + $0x8] sm:$0xff]
    %v428 = vld [vmem:[%s425 + $0x10] sm:$0xff]
    %v429 = vld [vmem:[%s425 + $0x18] sm:$0xff]
    %v430 = vld [vmem:[%s425 + $0x20] sm:$0xff]
    %v431 = vld [vmem:[%s425 + $0x28] sm:$0xff]
    %v432 = vld [vmem:[%s425 + $0x30] sm:$0xff]
    %v433 = vld [vmem:[%s425 + $0x38] sm:$0xff]
    %v434 = vld [vmem:[%s425 + $0x40] sm:$0xff]
    %v435 = vld [vmem:[%s425 + $0x48] sm:$0xff]
    %v436 = vld [vmem:[%s425 + $0x50] sm:$0xff]
    %v437 = vld [vmem:[%s425 + $0x58] sm:$0xff]
    %v438 = vld [vmem:[%s425 + $0x60] sm:$0xff]
    %v439 = vld [vmem:[%s425 + $0x68] sm:$0xff]
    %v440 = vld [vmem:[%s425 + $0x70] sm:$0xff]
    %v441 = vld [vmem:[%s425 + $0x78] sm:$0xff]
    %442 = vmatprep.subr.mxu0 0.0
    %443 = vmatpush1.msra.mxu0 %v426
    %444 = vmatprep.subr.mxu0 0.0
    %445 = vmatpush1.msra.mxu0 %v427
    %446 = vmatprep.subr.mxu0 0.0
    %447 = vmatpush1.msra.mxu0 %v428
    %448 = vmatprep.subr.mxu0 0.0
    %449 = vmatpush1.msra.mxu0 %v429
    %450 = vmatprep.subr.mxu0 0.0
    %451 = vmatpush1.msra.mxu0 %v430
    %452 = vmatprep.subr.mxu0 0.0
    %453 = vmatpush1.msra.mxu0 %v431
    %454 = vmatprep.subr.mxu0 0.0
    %455 = vmatpush1.msra.mxu0 %v432
    %456 = vmatprep.subr.mxu0 0.0
    %457 = vmatpush1.msra.mxu0 %v433
    %458 = vmatprep.subr.mxu0 0.0
    %459 = vmatpush1.msra.mxu0 %v434
    %460 = vmatprep.subr.mxu0 0.0
    %461 = vmatpush1.msra.mxu0 %v435
    %462 = vmatprep.subr.mxu0 0.0
    %463 = vmatpush1.msra.mxu0 %v436
    %464 = vmatprep.subr.mxu0 0.0
    %465 = vmatpush1.msra.mxu0 %v437
    %466 = vmatprep.subr.mxu0 0.0
    %467 = vmatpush1.msra.mxu0 %v438
    %468 = vmatprep.subr.mxu0 0.0
    %469 = vmatpush1.msra.mxu0 %v439
    %470 = vmatprep.subr.mxu0 0.0
    %471 = vmatpush1.msra.mxu0 %v440
    %472 = vmatprep.subr.mxu0 0.0
    %473 = vmatpush1.msra.mxu0 %v441
    %474 = vmatprep.subr.mxu0 0.0
    %475 = vmatpush1.msra.mxu0 0.0
    %476 = vmatprep.subr.mxu0 0.0
    %477 = vmatpush1.msra.mxu0 0.0
    %478 = vmatprep.subr.mxu0 0.0
    %479 = vmatpush1.msra.mxu0 0.0
    %480 = vmatprep.subr.mxu0 0.0
    %481 = vmatpush1.msra.mxu0 0.0
    %482 = vmatprep.subr.mxu0 0.0
    %483 = vmatpush1.msra.mxu0 0.0
    %484 = vmatprep.subr.mxu0 0.0
    %485 = vmatpush1.msra.mxu0 0.0
    %486 = vmatprep.subr.mxu0 0.0
    %487 = vmatpush1.msra.mxu0 0.0
    %488 = vmatprep.subr.mxu0 0.0
    %489 = vmatpush1.msra.mxu0 0.0
    %490 = vmatprep.subr.mxu0 0.0
    %491 = vmatpush1.msra.mxu0 0.0
    %492 = vmatprep.subr.mxu0 0.0
    %493 = vmatpush1.msra.mxu0 0.0
    %494 = vmatprep.subr.mxu0 0.0
    %495 = vmatpush1.msra.mxu0 0.0
    %496 = vmatprep.subr.mxu0 0.0
    %497 = vmatpush1.msra.mxu0 0.0
    %498 = vmatprep.subr.mxu0 0.0
    %499 = vmatpush1.msra.mxu0 0.0
    %500 = vmatprep.subr.mxu0 0.0
    %501 = vmatpush1.msra.mxu0 0.0
    %502 = vmatprep.subr.mxu0 0.0
    %503 = vmatpush1.msra.mxu0 0.0
    %504 = vmatprep.subr.mxu0 0.0
    %505 = vmatpush1.msra.mxu0 0.0
    %506 = vmatprep.mubr.f32.mxu0 0.0
    %507 = vmatmul.mubr.f32.gmra.mrb[0].mxu0 %v421
    %v508 = vpop.f32.mrb[0].mxu0
    %v509 = vadd.f32 0.0, %v508
    %v510 = vpop.f32.mrb[0].mxu0
    %511 = vmatprep.mubr.f32.mxu0 0.0
    %512 = vmatmul.mubr.f32.gmra.mrb[0].mxu0 %v422
    %v513 = vpop.f32.mrb[0].mxu0
    %v514 = vadd.f32 0.0, %v513
    %v515 = vpop.f32.mrb[0].mxu0
    %516 = vmatprep.mubr.f32.mxu0 0.0
    %517 = vmatmul.mubr.f32.gmra.mrb[0].mxu0 %v423
    %v518 = vpop.f32.mrb[0].mxu0
    %v519 = vadd.f32 0.0, %v518
    %v520 = vpop.f32.mrb[0].mxu0
    %521 = vmatprep.mubr.f32.mxu0 0.0
    %522 = vmatmul.mubr.f32.gmra.mrb[0].mxu0 %v424
    %v523 = vpop.f32.mrb[0].mxu0
    %v524 = vadd.f32 0.0, %v523
    %v525 = vpop.f32.mrb[0].mxu0
    %526 = vdwg.mxu0
    %527 = vmatprep.subr.mxu0 0.0
    %528 = vmatpush1.msra.mxu0 %v405
    %529 = vmatprep.subr.mxu0 0.0
    %530 = vmatpush1.msra.mxu0 %v406
    %531 = vmatprep.subr.mxu0 0.0
    %532 = vmatpush1.msra.mxu0 %v407
    %533 = vmatprep.subr.mxu0 0.0
    %534 = vmatpush1.msra.mxu0 %v408
    %535 = vmatprep.subr.mxu0 0.0
    %536 = vmatpush1.msra.mxu0 %v409
    %537 = vmatprep.subr.mxu0 0.0
    %538 = vmatpush1.msra.mxu0 %v410
    %539 = vmatprep.subr.mxu0 0.0
    %540 = vmatpush1.msra.mxu0 %v411
    %541 = vmatprep.subr.mxu0 0.0
    %542 = vmatpush1.msra.mxu0 %v412
    %543 = vmatprep.subr.mxu0 0.0
    %544 = vmatpush1.msra.mxu0 %v413
    %545 = vmatprep.subr.mxu0 0.0
    %546 = vmatpush1.msra.mxu0 %v414
    %547 = vmatprep.subr.mxu0 0.0
    %548 = vmatpush1.msra.mxu0 %v415
    %549 = vmatprep.subr.mxu0 0.0
    %550 = vmatpush1.msra.mxu0 %v416
    %551 = vmatprep.subr.mxu0 0.0
    %552 = vmatpush1.msra.mxu0 %v417
    %553 = vmatprep.subr.mxu0 0.0
    %554 = vmatpush1.msra.mxu0 %v418
    %555 = vmatprep.subr.mxu0 0.0
    %556 = vmatpush1.msra.mxu0 %v419
    %557 = vmatprep.subr.mxu0 0.0
    %558 = vmatpush1.msra.mxu0 %v420
    %559 = vmatprep.subr.mxu0 0.0
    %560 = vmatpush1.msra.mxu0 0.0
    %561 = vmatprep.subr.mxu0 0.0
    %562 = vmatpush1.msra.mxu0 0.0
    %563 = vmatprep.subr.mxu0 0.0
    %564 = vmatpush1.msra.mxu0 0.0
    %565 = vmatprep.subr.mxu0 0.0
    %566 = vmatpush1.msra.mxu0 0.0
    %567 = vmatprep.subr.mxu0 0.0
    %568 = vmatpush1.msra.mxu0 0.0
    %569 = vmatprep.subr.mxu0 0.0
    %570 = vmatpush1.msra.mxu0 0.0
    %571 = vmatprep.subr.mxu0 0.0
    %572 = vmatpush1.msra.mxu0 0.0
    %573 = vmatprep.subr.mxu0 0.0
    %574 = vmatpush1.msra.mxu0 0.0
    %575 = vmatprep.subr.mxu0 0.0
    %576 = vmatpush1.msra.mxu0 0.0
    %577 = vmatprep.subr.mxu0 0.0
    %578 = vmatpush1.msra.mxu0 0.0
    %579 = vmatprep.subr.mxu0 0.0
    %580 = vmatpush1.msra.mxu0 0.0
    %581 = vmatprep.subr.mxu0 0.0
    %582 = vmatpush1.msra.mxu0 0.0
    %583 = vmatprep.subr.mxu0 0.0
    %584 = vmatpush1.msra.mxu0 0.0
    %585 = vmatprep.subr.mxu0 0.0
    %586 = vmatpush1.msra.mxu0 0.0
    %587 = vmatprep.subr.mxu0 0.0
    %588 = vmatpush1.msra.mxu0 0.0
    %589 = vmatprep.subr.mxu0 0.0
    %590 = vmatpush1.msra.mxu0 0.0
    %591 = vmatprep.mubr.f32.mxu0 0.0
    %592 = vmatmul.mubr.f32.gmra.mrb[0].mxu0 %v400
    %v593 = vpop.f32.mrb[0].mxu0
    %v594 = vadd.f32 %v509, %v593
    %v595 = vpop.f32.mrb[0].mxu0
    %596 = vmatprep.mubr.f32.mxu0 0.0
    %597 = vmatmul.mubr.f32.gmra.mrb[0].mxu0 %v401
    %v598 = vpop.f32.mrb[0].mxu0
    %v599 = vadd.f32 %v514, %v598
    %v600 = vpop.f32.mrb[0].mxu0
    %601 = vmatprep.mubr.f32.mxu0 0.0
    %602 = vmatmul.mubr.f32.gmra.mrb[0].mxu0 %v402
    %v603 = vpop.f32.mrb[0].mxu0
    %v604 = vadd.f32 %v519, %v603
    %v605 = vpop.f32.mrb[0].mxu0
    %606 = vmatprep.mubr.f32.mxu0 0.0
    %607 = vmatmul.mubr.f32.gmra.mrb[0].mxu0 %v403
    %v608 = vpop.f32.mrb[0].mxu0
    %v609 = vadd.f32 %v524, %v608
    %v610 = vpop.f32.mrb[0].mxu0
    %611 = vdwg.mxu0
    %v612 = vld [vmem:[%s47 + $0x2] sm:$0xff]
    %v613 = vld [vmem:[%s47 + $0xa] sm:$0xff]
    %v614 = vld [vmem:[%s47 + $0x1a] sm:$0xff]
    %v615 = vld [vmem:[%s47 + $0x22] sm:$0xff]
    %s616 = scalar_lea.vmem [#allocation6], 640
    %v617 = vld [vmem:[%s616] sm:$0xff]
    %v618 = vld [vmem:[%s616 + $0x8] sm:$0xff]
    %v619 = vld [vmem:[%s616 + $0x10] sm:$0xff]
    %v620 = vld [vmem:[%s616 + $0x18] sm:$0xff]
    %v621 = vld [vmem:[%s616 + $0x20] sm:$0xff]
    %v622 = vld [vmem:[%s616 + $0x28] sm:$0xff]
    %v623 = vld [vmem:[%s616 + $0x30] sm:$0xff]
    %v624 = vld [vmem:[%s616 + $0x38] sm:$0xff]
    %v625 = vld [vmem:[%s616 + $0x40] sm:$0xff]
    %v626 = vld [vmem:[%s616 + $0x48] sm:$0xff]
    %v627 = vld [vmem:[%s616 + $0x50] sm:$0xff]
    %v628 = vld [vmem:[%s616 + $0x58] sm:$0xff]
    %v629 = vld [vmem:[%s616 + $0x60] sm:$0xff]
    %v630 = vld [vmem:[%s616 + $0x68] sm:$0xff]
    %v631 = vld [vmem:[%s616 + $0x70] sm:$0xff]
    %v632 = vld [vmem:[%s616 + $0x78] sm:$0xff]
    %633 = vmatprep.subr.mxu0 0.0
    %634 = vmatpush1.msra.mxu0 %v617
    %635 = vmatprep.subr.mxu0 0.0
    %636 = vmatpush1.msra.mxu0 %v618
    %637 = vmatprep.subr.mxu0 0.0
    %638 = vmatpush1.msra.mxu0 %v619
    %639 = vmatprep.subr.mxu0 0.0
    %640 = vmatpush1.msra.mxu0 %v620
    %641 = vmatprep.subr.mxu0 0.0
    %642 = vmatpush1.msra.mxu0 %v621
    %643 = vmatprep.subr.mxu0 0.0
    %644 = vmatpush1.msra.mxu0 %v622
    %645 = vmatprep.subr.mxu0 0.0
    %646 = vmatpush1.msra.mxu0 %v623
    %647 = vmatprep.subr.mxu0 0.0
    %648 = vmatpush1.msra.mxu0 %v624
    %649 = vmatprep.subr.mxu0 0.0
    %650 = vmatpush1.msra.mxu0 %v625
    %651 = vmatprep.subr.mxu0 0.0
    %652 = vmatpush1.msra.mxu0 %v626
    %653 = vmatprep.subr.mxu0 0.0
    %654 = vmatpush1.msra.mxu0 %v627
    %655 = vmatprep.subr.mxu0 0.0
    %656 = vmatpush1.msra.mxu0 %v628
    %657 = vmatprep.subr.mxu0 0.0
    %658 = vmatpush1.msra.mxu0 %v629
    %659 = vmatprep.subr.mxu0 0.0
    %660 = vmatpush1.msra.mxu0 %v630
    %661 = vmatprep.subr.mxu0 0.0
    %662 = vmatpush1.msra.mxu0 %v631
    %663 = vmatprep.subr.mxu0 0.0
    %664 = vmatpush1.msra.mxu0 %v632
    %665 = vmatprep.subr.mxu0 0.0
    %666 = vmatpush1.msra.mxu0 0.0
    %667 = vmatprep.subr.mxu0 0.0
    %668 = vmatpush1.msra.mxu0 0.0
    %669 = vmatprep.subr.mxu0 0.0
    %670 = vmatpush1.msra.mxu0 0.0
    %671 = vmatprep.subr.mxu0 0.0
    %672 = vmatpush1.msra.mxu0 0.0
    %673 = vmatprep.subr.mxu0 0.0
    %674 = vmatpush1.msra.mxu0 0.0
    %675 = vmatprep.subr.mxu0 0.0
    %676 = vmatpush1.msra.mxu0 0.0
    %677 = vmatprep.subr.mxu0 0.0
    %678 = vmatpush1.msra.mxu0 0.0
    %679 = vmatprep.subr.mxu0 0.0
    %680 = vmatpush1.msra.mxu0 0.0
    %681 = vmatprep.subr.mxu0 0.0
    %682 = vmatpush1.msra.mxu0 0.0
    %683 = vmatprep.subr.mxu0 0.0
    %684 = vmatpush1.msra.mxu0 0.0
    %685 = vmatprep.subr.mxu0 0.0
    %686 = vmatpush1.msra.mxu0 0.0
    %687 = vmatprep.subr.mxu0 0.0
    %688 = vmatpush1.msra.mxu0 0.0
    %689 = vmatprep.subr.mxu0 0.0
    %690 = vmatpush1.msra.mxu0 0.0
    %691 = vmatprep.subr.mxu0 0.0
    %692 = vmatpush1.msra.mxu0 0.0
    %693 = vmatprep.subr.mxu0 0.0
    %694 = vmatpush1.msra.mxu0 0.0
    %695 = vmatprep.subr.mxu0 0.0
    %696 = vmatpush1.msra.mxu0 0.0
    %697 = vmatprep.mubr.f32.mxu0 0.0
    %698 = vmatmul.mubr.f32.gmra.mrb[0].mxu0 %v612
    %v699 = vpop.f32.mrb[0].mxu0
    %v700 = vadd.f32 0.0, %v699
    %v701 = vpop.f32.mrb[0].mxu0
    %702 = vmatprep.mubr.f32.mxu0 0.0
    %703 = vmatmul.mubr.f32.gmra.mrb[0].mxu0 %v613
    %v704 = vpop.f32.mrb[0].mxu0
    %v705 = vadd.f32 0.0, %v704
    %v706 = vpop.f32.mrb[0].mxu0
    %707 = vmatprep.mubr.f32.mxu0 0.0
    %708 = vmatmul.mubr.f32.gmra.mrb[0].mxu0 %v614
    %v709 = vpop.f32.mrb[0].mxu0
    %v710 = vadd.f32 0.0, %v709
    %v711 = vpop.f32.mrb[0].mxu0
    %712 = vmatprep.mubr.f32.mxu0 0.0
    %713 = vmatmul.mubr.f32.gmra.mrb[0].mxu0 %v615
    %v714 = vpop.f32.mrb[0].mxu0
    %v715 = vadd.f32 0.0, %v714
    %v716 = vpop.f32.mrb[0].mxu0
    %717 = vdwg.mxu0
    %v718 = vadd.f32 %v594, %v700
    %v719 = vadd.f32 %v599, %v705
    %v720 = vadd.f32 %v604, %v710
    %v721 = vadd.f32 %v609, %v715
    %s722 = scalar_lea.vmem %s2, 1
    %v723 = vld [vmem:[%s722] sm:$0x1]
    %v725 = vlaneseq
    %v726 = vshrl.u32 %v725, 7
    %v727 = vsub.s32 0, %v726
    %v728 = vrot.slane %v723, %v727
    %v730 = vadd.f32 %v718, %v728
    %v731 = vadd.f32 %v719, %v728
    %v732 = vadd.f32 %v720, %v728
    %v733 = vadd.f32 %v721, %v728
    %v734 = vadd.f32 %v730, %v52
    %v735 = vadd.f32 %v731, %v53
    %v736 = vadd.f32 %v732, %v54
    %v737 = vadd.f32 %v733, %v55
    %738 = vst [vmem:[#allocation8] sm:$0xff] %v734
    %739 = vst [vmem:[#allocation8 + $0x8] sm:$0xff] %v735
    %740 = vst [vmem:[#allocation8 + $0x10] sm:$0xff] %v736
    %741 = vst [vmem:[#allocation8 + $0x18] sm:$0xff] %v737
    // Predicated region
    $region22: #{tpu_custom_call.1} parent=1 // pred_check
      _
    $region23: #{tpu_custom_call.1} parent=1 // pred_check_branch
      %743 = sbr.rel (0) target = $region25
    $region24: #{tpu_custom_call.1} parent=1 // pred_region
      %s745 = ssub.s32 512, 512
      %746 = vsyncadd [#allocation5], %s745
      %s747 = sshll.u32 [#allocation8], 4
      %s748 = int_to_ptr.vmem [resolvable:$true] %s747
      %753 = dma.vmem_to_hbm [thread:$0]  %s748, 512, %s3, [#allocation5], 128, 128, 8
    $region25: #{tpu_custom_call.1} parent=1 // pred_fallthru
      _
    // Predicated region
    $region26: #{tpu_custom_call.1} parent=1 // pred_check
      _
    $region27: #{tpu_custom_call.1} parent=1 // pred_check_branch
      %755 = sbr.rel (0) target = $region29
    $region28: #{tpu_custom_call.1} parent=1 // pred_region
      %756 = dma.done [#allocation5], 512
    $region29: #{tpu_custom_call.1} parent=1 // pred_fallthru
      _
    %757 = vsyncpa [#allocation4], 1
    %758 = vsyncpa [#allocation7], 1
    %759 = vsyncpa [#allocation5], 1

</llo_original>
